<compile_context>
chip_gen: v7x
topology: tpu7x:2x2x1
jax: 0.10.0
libtpu: 0.0.40
codegen_flags: <defaults>
</compile_context>

<pallas_src>
import functools
import math

import jax
import jax.numpy as jnp
from jax import lax
from jax.experimental import pallas as pl
from jax.experimental.pallas import tpu as pltpu


# ----------------------------------------------------------------------------
# Generation-aware VMEM budget / tile limits
# ----------------------------------------------------------------------------
try:
    _VMEM_CAP = int(pltpu.get_tpu_info().vmem_capacity_bytes)
except Exception:  # off-TPU / older jax fallback: assume the tightest (v7x) budget
    _VMEM_CAP = 64 * 1024 * 1024

# Leave ~16 MiB headroom for the compiler; caps at 96 MiB on 128 MiB parts (v5e/v6e),
# lands at 48 MiB on v7x (64 MiB physical per TensorCore).
_VMEM_LIMIT_BYTES = int(min(max(_VMEM_CAP - 16 * 1024 * 1024, 32 * 1024 * 1024),
                            96 * 1024 * 1024))
_BIG_VMEM = _VMEM_CAP >= 100 * 1024 * 1024

# GEMM max tiles (bigger M tiles where VMEM allows; N/K kept 128/256-aligned for the MXU).
_LIN_TM = 1024 if _BIG_VMEM else 512
_LIN_TN = 512
_LIN_TK = 512

# Attention tiles: query tile and KV (flash) tile.
_ATT_TQ = 256
_ATT_TK = 512

_APPROX_RECIPROCAL = True   # EUP vrcp for the softmax denominator; set False for exact


def _round_up(x, m):
    return (x + m - 1) // m * m


def _tile_and_pad(dim, max_tile, align):
    """Return (tile, padded_dim).  Full-dim blocks are always legal (no padding); otherwise
    pick a power-of-two tile >= align that divides dim, else fall back to max_tile with
    zero padding (padding handled by the callers)."""
    if dim <= max_tile:
        return dim, dim
    t = max_tile
    while t >= align:
        if dim % t == 0:
            return t, dim
        t //= 2
    return max_tile, _round_up(dim, max_tile)


# ----------------------------------------------------------------------------
# Tiled, pipelined linear:  y = x @ W + b
# ----------------------------------------------------------------------------
def _linear_kernel(x_ref, w_ref, b_ref, o_ref, acc_ref):
    k = pl.program_id(2)

    @pl.when(k == 0)
    def _():
        acc_ref[...] = jnp.zeros(acc_ref.shape, acc_ref.dtype)

    acc_ref[...] += jnp.dot(x_ref[...], w_ref[...],
                            preferred_element_type=jnp.float32)

    @pl.when(k == pl.num_programs(2) - 1)
    def _():
        o_ref[...] = (acc_ref[...] + b_ref[...].astype(jnp.float32)).astype(o_ref.dtype)


def linear_pallas(x, w, b):
    """y = x @ w + b with x:(M,K), w:(K,N), b:(N,).  Tiled over (M, N, K); non-divisible
    dims are zero-padded up front and sliced off the output (zero padding is exact for
    the K reduction)."""
    M, K = x.shape
    K2, N = w.shape
    assert K == K2 and b.shape == (N,)

    tm, Mp = _tile_and_pad(M, _LIN_TM, 8)
    tn, Np = _tile_and_pad(N, _LIN_TN, 128)
    tk, Kp = _tile_and_pad(K, _LIN_TK, 128)

    if (Mp, Kp) != (M, K):
        x = jnp.pad(x, ((0, Mp - M), (0, Kp - K)))
    if (Kp, Np) != (K, N):
        w = jnp.pad(w, ((0, Kp - K), (0, Np - N)))
    b2 = (jnp.pad(b, (0, Np - N)) if Np != N else b).reshape(1, Np)

    grid = (Mp // tm, Np // tn, Kp // tk)
    cost = pl.CostEstimate(
        flops=2 * M * N * K + M * N,
        transcendentals=0,
        bytes_accessed=(M * K + K * N + N + M * N) * x.dtype.itemsize,
    )
    out = pl.pallas_call(
        _linear_kernel,
        out_shape=jax.ShapeDtypeStruct((Mp, Np), x.dtype),
        grid_spec=pltpu.PrefetchScalarGridSpec(
            num_scalar_prefetch=0,
            grid=grid,
            in_specs=[
                pl.BlockSpec((tm, tk), lambda i, j, k: (i, k)),
                pl.BlockSpec((tk, tn), lambda i, j, k: (k, j)),
                pl.BlockSpec((1, tn), lambda i, j, k: (0, j)),
            ],
            out_specs=pl.BlockSpec((tm, tn), lambda i, j, k: (i, j)),
            scratch_shapes=[pltpu.VMEM((tm, tn), jnp.float32)],
        ),
        compiler_params=pltpu.CompilerParams(
            dimension_semantics=("parallel", "parallel", "arbitrary"),
            vmem_limit_bytes=_VMEM_LIMIT_BYTES,
        ),
        cost_estimate=cost,
    )(x, w, b2)
    if (Mp, Np) != (M, N):
        out = out[:M, :N]
    return out


# ----------------------------------------------------------------------------
# Flash (online-softmax) multi-head attention.
# Grid = (B, Lq/tq, Lk/tk); all heads of one (batch, q-tile) are processed per step via
# static in-kernel column slices; output is a single lane-dense (tq, E) store.
# ----------------------------------------------------------------------------
def _mha_flash_kernel(q_ref, k_ref, v_ref, o_ref, m_sc, l_sc, acc_sc, *,
                      num_heads, kv_len, kv_tile, mask_kv):
    kv = pl.program_id(2)

    @pl.when(kv == 0)
    def _():
        m_sc[...] = jnp.full(m_sc.shape, -jnp.inf, m_sc.dtype)
        l_sc[...] = jnp.zeros(l_sc.shape, l_sc.dtype)
        acc_sc[...] = jnp.zeros(acc_sc.shape, acc_sc.dtype)

    # Keep q/k/v in storage dtype (bf16 MXU fast path when applicable); f32 only through
    # preferred_element_type + the f32 scratch accumulators.  The 1/sqrt(Dh) scale is
    # pre-folded into the fused Q projection weights.
    q = q_ref[0]                        # (tq, E)
    k = k_ref[0]                        # (tk, E)
    v = v_ref[0]                        # (tk, E)
    E = q.shape[-1]
    dh = E // num_heads

    if mask_kv:  # only traced when the KV length was zero-padded to a tile multiple
        col = (lax.broadcasted_iota(jnp.int32, (q.shape[0], k.shape[0]), 1)
               + kv * kv_tile)
        valid = col < kv_len

    for h in range(num_heads):
        lo = h * dh
        # TODO(synk): when Dh < 128 these column slices are not lane-aligned and the QK^T
        # contraction under-fills the MXU; a head-major (B*H, L, Dh) projection layout would
        # address both at the cost of restructuring the projection out_specs.
        q_h = q[:, lo:lo + dh]          # (tq, Dh)
        k_h = k[:, lo:lo + dh]          # (tk, Dh)
        v_h = v[:, lo:lo + dh]          # (tk, Dh)

        # Contract head dims of both operands directly (no k_h.T materialization).
        s = lax.dot_general(q_h, k_h,
                            dimension_numbers=(((1,), (1,)), ((), ())),
                            preferred_element_type=jnp.float32)      # (tq, tk)
        if mask_kv:
            s = jnp.where(valid, s, -jnp.inf)

        m_prev = m_sc[h]                                             # (tq, 1)
        m_new = jnp.maximum(m_prev, jnp.max(s, axis=-1, keepdims=True))
        alpha = jnp.exp(m_prev - m_new)                              # (tq, 1)
        p = jnp.exp(s - m_new)                                       # (tq, tk), <= 1
        l_sc[h] = alpha * l_sc[h] + jnp.sum(p, axis=-1, keepdims=True)
        m_sc[h] = m_new
        acc_sc[:, lo:lo + dh] = (alpha * acc_sc[:, lo:lo + dh]
                                 + jnp.dot(p.astype(v_h.dtype), v_h,
                                           preferred_element_type=jnp.float32))

    @pl.when(kv == pl.num_programs(2) - 1)
    def _():
        # Deferred normalization: O(tq*E) work instead of O(tq*Lk) per head; exp(s-m) <= 1
        # so the unnormalized accumulation above is numerically safe.
        for h in range(num_heads):
            lo = h * dh
            l_h = l_sc[h]
            inv = pl.reciprocal(l_h, approx=True) if _APPROX_RECIPROCAL else 1.0 / l_h
            acc_sc[:, lo:lo + dh] = acc_sc[:, lo:lo + dh] * inv
        o_ref[0] = acc_sc[...].astype(o_ref.dtype)   # single lane-dense (tq, E) store


def attention_pallas(q, k, v, num_heads):
    """q:(B,Lq,E), k/v:(B,Lk,E) -> (B,Lq,E); per-head softmax(q k^T) v.  Assumes the
    1/sqrt(Dh) scale is already folded into the Q projection weights."""
    B, Lq, E = q.shape
    _, Lk, _ = k.shape
    assert E % num_heads == 0
    dtype = q.dtype

    tq, Lq_p = _tile_and_pad(Lq, _ATT_TQ, 8)     # padded query rows are sliced off
    tk, Lk_p = _tile_and_pad(Lk, _ATT_TK, 128)   # padded keys get masked in-kernel

    if Lq_p != Lq:
        q = jnp.pad(q, ((0, 0), (0, Lq_p - Lq), (0, 0)))
    if Lk_p != Lk:
        k = jnp.pad(k, ((0, 0), (0, Lk_p - Lk), (0, 0)))
        v = jnp.pad(v, ((0, 0), (0, Lk_p - Lk), (0, 0)))
    mask_kv = (Lk_p != Lk)

    kernel = functools.partial(_mha_flash_kernel, num_heads=num_heads,
                               kv_len=Lk, kv_tile=tk, mask_kv=mask_kv)
    grid = (B, Lq_p // tq, Lk_p // tk)
    cost = pl.CostEstimate(
        flops=4 * B * Lq * Lk * E,
        transcendentals=B * num_heads * Lq * Lk,
        bytes_accessed=(2 * B * Lq * E + 2 * B * Lk * E) * q.dtype.itemsize,
    )
    out = pl.pallas_call(
        kernel,
        out_shape=jax.ShapeDtypeStruct((B, Lq_p, E), dtype),
        grid_spec=pltpu.PrefetchScalarGridSpec(
            num_scalar_prefetch=0,
            grid=grid,
            in_specs=[
                pl.BlockSpec((1, tq, E), lambda b, qi, ki: (b, qi, 0)),
                pl.BlockSpec((1, tk, E), lambda b, qi, ki: (b, ki, 0)),
                pl.BlockSpec((1, tk, E), lambda b, qi, ki: (b, ki, 0)),
            ],
            out_specs=pl.BlockSpec((1, tq, E), lambda b, qi, ki: (b, qi, 0)),
            scratch_shapes=[
                pltpu.VMEM((num_heads, tq, 1), jnp.float32),   # running max (per head)
                pltpu.VMEM((num_heads, tq, 1), jnp.float32),   # running denom (per head)
                pltpu.VMEM((tq, E), jnp.float32),              # output accumulator slab
            ],
        ),
        compiler_params=pltpu.CompilerParams(
            dimension_semantics=("parallel", "parallel", "arbitrary"),
            vmem_limit_bytes=_VMEM_LIMIT_BYTES,
        ),
        cost_estimate=cost,
    )(q, k, v)
    if Lq_p != Lq:
        out = out[:, :Lq, :]
    return out


# ----------------------------------------------------------------------------
# CrossAttention forward (fused projections + flash MHA kernel + out_proj)
# ----------------------------------------------------------------------------
def cross_attention_forward(fused, query_seq, key_seq, value_seq):
    """query_seq/key_seq/value_seq: (B, L, input_dim) -> (B, Lq, hidden_dim)."""
    B, Lq, Din = query_seq.shape
    _, Lk, _ = key_seq.shape
    E = fused["Wq_eff"].shape[1]
    H = fused["num_heads"]

    # Fused (outer proj ∘ MHA in-proj), one GEMM per stream; scale folded into Q weights.
    q = linear_pallas(query_seq.reshape(B * Lq, Din), fused["Wq_eff"], fused["bq_eff"])
    k = linear_pallas(key_seq.reshape(B * Lk, Din), fused["Wk_eff"], fused["bk_eff"])
    v = linear_pallas(value_seq.reshape(B * Lk, Din), fused["Wv_eff"], fused["bv_eff"])

    # Flash multi-head attention (no HBM head transposes).
    o = attention_pallas(q.reshape(B, Lq, E), k.reshape(B, Lk, E), v.reshape(B, Lk, E), H)

    # MHA out_proj.
    # TODO(synk): optionally fuse out_proj into the attention finalize (resident Wo/bo VMEM
    # blocks) to drop one (B*Lq, E) HBM round trip when E^2 weights fit the VMEM budget.
    out = linear_pallas(o.reshape(B * Lq, E), fused["Wo"], fused["bo"])
    return out.reshape(B, Lq, E)

# TODO(synk): attn_mask / key_padding_mask of nn.MultiheadAttention are not implemented
# (the module's forward is exercised with mask=None).


# ----------------------------------------------------------------------------
# Parameters: torch-style unfused params + one-time algebraic fusion
# ----------------------------------------------------------------------------
def init_params(key, input_dim, hidden_dim, num_heads):
    ks = jax.random.split(key, 10)

    def uniform(k, shape, fan_in):
        bound = 1.0 / (fan_in ** 0.5)
        return jax.random.uniform(k, shape, jnp.float32, -bound, bound)

    E = hidden_dim
    return {
        "num_heads": num_heads,
        # outer Linear(input_dim, hidden_dim), stored as (in, out)
        "Wq": uniform(ks[0], (input_dim, E), input_dim),
        "bq": uniform(ks[1], (E,), input_dim),
        "Wk": uniform(ks[2], (input_dim, E), input_dim),
        "bk": uniform(ks[3], (E,), input_dim),
        "Wv": uniform(ks[4], (input_dim, E), input_dim),
        "bv": uniform(ks[5], (E,), input_dim),
        # MHA in_proj (3E x E in torch) split into q/k/v, stored as (in, out)
        "Wq_in": uniform(ks[6], (E, E), E),
        "Wk_in": uniform(ks[7], (E, E), E),
        "Wv_in": uniform(ks[8], (E, E), E),
        "bq_in": jnp.zeros((E,), jnp.float32),
        "bk_in": jnp.zeros((E,), jnp.float32),
        "bv_in": jnp.zeros((E,), jnp.float32),
        # MHA out_proj
        "Wo": uniform(ks[9], (E, E), E),
        "bo": jnp.zeros((E,), jnp.float32),
    }


def fuse_params(p):
    """One-time algebraic fusion of (outer projection) ∘ (MHA in-projection), with torch's
    1/sqrt(head_dim) softmax scale folded into the fused Q weights (zero runtime cost)."""
    E = p["Wq_in"].shape[1]
    dh = E // p["num_heads"]
    scale = 1.0 / math.sqrt(dh)
    return {
        "num_heads": p["num_heads"],
        "Wq_eff": (p["Wq"] @ p["Wq_in"]) * scale,
        "bq_eff": (p["bq"] @ p["Wq_in"] + p["bq_in"]) * scale,
        "Wk_eff": p["Wk"] @ p["Wk_in"], "bk_eff": p["bk"] @ p["Wk_in"] + p["bk_in"],
        "Wv_eff": p["Wv"] @ p["Wv_in"], "bv_eff": p["bv"] @ p["Wv_in"] + p["bv_in"],
        "Wo": p["Wo"], "bo": p["bo"],
    }


# ----------------------------------------------------------------------------
# Pure-JAX reference with the ORIGINAL unfused math (verifies fusion + kernels)
# ----------------------------------------------------------------------------
def reference_forward(params, query_seq, key_seq, value_seq):
    B, Lq, Din = query_seq.shape
    _, Lk, _ = key_seq.shape
    E = params["Wq"].shape[1]
    H = params["num_heads"]
    Dh = E // H

    q = query_seq @ params["Wq"] + params["bq"]
    k = key_seq @ params["Wk"] + params["bk"]
    v = value_seq @ params["Wv"] + params["bv"]
    qi = q @ params["Wq_in"] + params["bq_in"]
    ki = k @ params["Wk_in"] + params["bk_in"]
    vi = v @ params["Wv_in"] + params["bv_in"]

    qh = qi.reshape(B, Lq, H, Dh).transpose(0, 2, 1, 3)
    kh = ki.reshape(B, Lk, H, Dh).transpose(0, 2, 1, 3)
    vh = vi.reshape(B, Lk, H, Dh).transpose(0, 2, 1, 3)
    s = jnp.einsum("bhqd,bhkd->bhqk", qh, kh) / (Dh ** 0.5)
    p = jax.nn.softmax(s, axis=-1)
    o = jnp.einsum("bhqk,bhkd->bhqd", p, vh)
    o = o.transpose(0, 2, 1, 3).reshape(B, Lq, E)
    return o @ params["Wo"] + params["bo"]


if __name__ == "__main__":
    # Small, shape-consistent example: sequences of shape (B, L, input_dim).
    B, Lq, Lk = 2, 8, 8
    input_dim, hidden_dim, num_heads = 16, 32, 4

    key = jax.random.PRNGKey(0)
    kp, kq, kk, kv = jax.random.split(key, 4)

    params = init_params(kp, input_dim, hidden_dim, num_heads)
    fused = fuse_params(params)

    query_seq = jax.random.normal(kq, (B, Lq, input_dim), jnp.float32)
    key_seq = jax.random.normal(kk, (B, Lk, input_dim), jnp.float32)
    value_seq = jax.random.normal(kv, (B, Lk, input_dim), jnp.float32)

    out = cross_attention_forward(fused, query_seq, key_seq, value_seq)
    out = jax.block_until_ready(out)

    ref = reference_forward(params, query_seq, key_seq, value_seq)
    assert out.shape == (B, Lq, hidden_dim)
    # Slightly relaxed tolerance: approx reciprocal (EUP vrcp) + re-associated fused GEMMs.
    assert jnp.allclose(out, ref, atol=5e-3, rtol=5e-3), "mismatch vs reference"

    print("KERNEL_OK")
</pallas_src>

<mosaic_0001>
module attributes {stable_mosaic.version = 11 : i64} {
  func.func @_linear_kernel(%arg0: i32, %arg1: i32, %arg2: i32, %arg3: memref<16x16xf32, #tpu.memory_space<vmem>>, %arg4: memref<16x32xf32, #tpu.memory_space<vmem>>, %arg5: memref<1x32xf32, #tpu.memory_space<vmem>>, %arg6: memref<16x32xf32, #tpu.memory_space<vmem>>, %arg7: memref<16x32xf32, #tpu.memory_space<vmem>>) attributes {dimension_semantics = [#tpu.dimension_semantics<parallel>, #tpu.dimension_semantics<parallel>, #tpu.dimension_semantics<arbitrary>], iteration_bounds = array<i64: 1, 1, 1>, scalar_prefetch = 0 : i64, scratch_operands = 1 : i64, tpu.core_type = #tpu.core_type<tc>, window_params = [{transform_indices = @transform_0, window_bounds = array<i64: 16, 16>}, {transform_indices = @transform_1, window_bounds = array<i64: 16, 32>}, {transform_indices = @transform_2, window_bounds = array<i64: 1, 32>}, {transform_indices = @transform_3, window_bounds = array<i64: 16, 32>}]} {
    %c0_i32 = arith.constant 0 : i32
    %0 = arith.cmpi eq, %arg2, %c0_i32 : i32
    %1 = arith.extui %0 : i1 to i32
    %c0_i32_0 = arith.constant 0 : i32
    %2 = arith.cmpi ne, %1, %c0_i32_0 : i32
    scf.if %2 {
      %cst_10 = arith.constant 0.000000e+00 : f32
      %12 = vector.broadcast %cst_10 : f32 to vector<16x32xf32>
      %c0_11 = arith.constant 0 : index
      %c0_12 = arith.constant 0 : index
      %13 = vector.load %arg7[%c0_11, %c0_12] : memref<16x32xf32, #tpu.memory_space<vmem>>, vector<16x32xf32>
      tpu.vector_store %arg7[%c0_11, %c0_12], %12 {strides = array<i32>} : memref<16x32xf32, #tpu.memory_space<vmem>>, vector<16x32xf32>,
    } else {
    }
    %c0 = arith.constant 0 : index
    %c0_1 = arith.constant 0 : index
    %3 = vector.load %arg7[%c0, %c0_1] : memref<16x32xf32, #tpu.memory_space<vmem>>, vector<16x32xf32>
    %c0_2 = arith.constant 0 : index
    %c0_3 = arith.constant 0 : index
    %4 = vector.load %arg3[%c0_2, %c0_3] : memref<16x16xf32, #tpu.memory_space<vmem>>, vector<16x16xf32>
    %c0_4 = arith.constant 0 : index
    %c0_5 = arith.constant 0 : index
    %5 = vector.load %arg4[%c0_4, %c0_5] : memref<16x32xf32, #tpu.memory_space<vmem>>, vector<16x32xf32>
    %cst = arith.constant dense<0.000000e+00> : vector<16x32xf32>
    %6 = tpu.matmul %4, %5, %cst {dimension_numbers = #tpu.dot_dimension_numbers<[1], [0], [0], [1], [0, 0, 1, 1], [], []>} : vector<16x16xf32>, vector<16x32xf32>, vector<16x32xf32> -> vector<16x32xf32>
    %7 = arith.addf %3, %6 : vector<16x32xf32>
    %c0_6 = arith.constant 0 : index
    %c0_7 = arith.constant 0 : index
    %8 = vector.load %arg7[%c0_6, %c0_7] : memref<16x32xf32, #tpu.memory_space<vmem>>, vector<16x32xf32>
    tpu.vector_store %arg7[%c0_6, %c0_7], %7 {strides = array<i32>} : memref<16x32xf32, #tpu.memory_space<vmem>>, vector<16x32xf32>,
    %c0_i32_8 = arith.constant 0 : i32
    %9 = arith.cmpi eq, %arg2, %c0_i32_8 : i32
    %10 = arith.extui %9 : i1 to i32
    %c0_i32_9 = arith.constant 0 : i32
    %11 = arith.cmpi ne, %10, %c0_i32_9 : i32
    scf.if %11 {
      %c0_10 = arith.constant 0 : index
      %c0_11 = arith.constant 0 : index
      %12 = vector.load %arg7[%c0_10, %c0_11] : memref<16x32xf32, #tpu.memory_space<vmem>>, vector<16x32xf32>
      %c0_12 = arith.constant 0 : index
      %c0_13 = arith.constant 0 : index
      %13 = vector.load %arg5[%c0_12, %c0_13] : memref<1x32xf32, #tpu.memory_space<vmem>>, vector<1x32xf32>
      %14 = vector.broadcast %13 : vector<1x32xf32> to vector<16x32xf32>
      %15 = arith.addf %12, %14 : vector<16x32xf32>
      %c0_14 = arith.constant 0 : index
      %c0_15 = arith.constant 0 : index
      %16 = vector.load %arg6[%c0_14, %c0_15] : memref<16x32xf32, #tpu.memory_space<vmem>>, vector<16x32xf32>
      tpu.vector_store %arg6[%c0_14, %c0_15], %15 {strides = array<i32>} : memref<16x32xf32, #tpu.memory_space<vmem>>, vector<16x32xf32>,
    } else {
    }
    return
  }
  func.func @transform_0(%arg0: i32, %arg1: i32, %arg2: i32) -> (i32, i32) {
    %c0_i32 = arith.constant 0 : i32
    return %arg0, %arg2 : i32, i32
  }
  func.func @transform_1(%arg0: i32, %arg1: i32, %arg2: i32) -> (i32, i32) {
    %c0_i32 = arith.constant 0 : i32
    return %arg2, %arg1 : i32, i32
  }
  func.func @transform_2(%arg0: i32, %arg1: i32, %arg2: i32) -> (i32, i32) {
    %c0_i32 = arith.constant 0 : i32
    %c0_i32_0 = arith.constant 0 : i32
    return %c0_i32, %arg1 : i32, i32
  }
  func.func @transform_3(%arg0: i32, %arg1: i32, %arg2: i32) -> (i32, i32) {
    %c0_i32 = arith.constant 0 : i32
    return %arg0, %arg1 : i32, i32
  }
}

</mosaic_0001>

<llo_original>
// kernel: tpu_custom_call.1
$region0: #{tpu_custom_call.1}
  #allocation0 [shape = 'u32[]', space=smem, size = 0x4, offset = 0x4, fixed_abs, tag = 'smem constant byte address 0x4 - core index']
  #allocation1 [shape = 'u32[144,128]{1,0:T(1,128)}', space=vmem, size = 0x12000, scoped, tag = 'internal scratch']
  #allocation2 [shape = 'f32[16,32]{1,0:T(8,128)}', space=vmem, size = 0x2000, scoped, tag = 'scratch operand']
  %s0 = inlined_call_operand.hbm [shape: f32[16,16], index: 0, kind: input, shape index: {}]
  %s1 = inlined_call_operand.hbm [shape: f32[16,32], index: 1, kind: input, shape index: {}]
  %s2 = inlined_call_operand.vmem [shape: f32[1,32], index: 2, kind: input, shape index: {}]
  %s3 = inlined_call_operand.hbm [shape: f32[16,32], index: 3, kind: output, shape index: {}]
  %s4 = sld [smem:[#allocation0]]
  $region38: #{tpu_custom_call.1} parent=0
    _
  %s6 = ssub.s32 1, %s4
  %s7 = scalar_select 0, %s6, %s4
  $region1: #{tpu_custom_call.1} parent=0
    #allocation3 [shape = 'u8[8192]{0}', space=vmem, size = 0x2000, scoped, tag = 'input window, operand 0, single buffered']
    #allocation4 [shape = 's32[1]{0}', space=sflag, size = 0x4, scoped, tag = 'scoped memory for tpu_custom_call.1']
    #allocation5 [shape = 's32[1]{0}', space=sflag, size = 0x4, scoped, tag = 'scoped memory for tpu_custom_call.1']
    #allocation6 [shape = 'u8[8192]{0}', space=vmem, size = 0x2000, scoped, tag = 'input window, operand 1, single buffered']
    #allocation7 [shape = 's32[1]{0}', space=sflag, size = 0x4, scoped, tag = 'scoped memory for tpu_custom_call.1']
    #allocation8 [shape = 'u8[8192]{0}', space=vmem, size = 0x2000, scoped, tag = 'output window, operand 0, single buffered']
    %8 = vsyncpa [#allocation4], 0
    %9 = vsyncpa [#allocation7], 0
    %10 = vsyncpa [#allocation5], 0
    // Predicated region
    $region2: #{tpu_custom_call.1} parent=1 // pred_check
      _
    $region3: #{tpu_custom_call.1} parent=1 // pred_check_branch
      %12 = sbr.rel (0) target = $region5
    $region4: #{tpu_custom_call.1} parent=1 // pred_region
      %s14 = ssub.s32 256, 256
      %15 = vsyncadd [#allocation4], %s14
      %s16 = sshll.u32 [#allocation3], 4
      %s17 = int_to_ptr.vmem [resolvable:$true] %s16
      %22 = dma.hbm_to_vmem [thread:$0]  %s0, 256, %s17, [#allocation4], 128, 128, 8
    $region5: #{tpu_custom_call.1} parent=1 // pred_fallthru
      _
    // Predicated region
    $region6: #{tpu_custom_call.1} parent=1 // pred_check
      _
    $region7: #{tpu_custom_call.1} parent=1 // pred_check_branch
      %24 = sbr.rel (0) target = $region9
    $region8: #{tpu_custom_call.1} parent=1 // pred_region
      %s26 = ssub.s32 256, 256
      %27 = vsyncadd [#allocation7], %s26
      %s28 = sshll.u32 [#allocation6], 4
      %s29 = int_to_ptr.vmem [resolvable:$true] %s28
      %34 = dma.hbm_to_vmem [thread:$0]  %s1, 256, %s29, [#allocation7], 128, 128, 8
    $region9: #{tpu_custom_call.1} parent=1 // pred_fallthru
      _
    // Predicated region
    $region10: #{tpu_custom_call.1} parent=1 // pred_check
      _
    $region11: #{tpu_custom_call.1} parent=1 // pred_check_branch
      %36 = sbr.rel (0) target = $region13
    $region12: #{tpu_custom_call.1} parent=1 // pred_region
      _
    $region13: #{tpu_custom_call.1} parent=1 // pred_fallthru
      _
    // Predicated region
    $region14: #{tpu_custom_call.1} parent=1 // pred_check
      _
    $region15: #{tpu_custom_call.1} parent=1 // pred_check_branch
      %38 = sbr.rel (0) target = $region17
    $region16: #{tpu_custom_call.1} parent=1 // pred_region
      %39 = dma.done [#allocation4], 256
    $region17: #{tpu_custom_call.1} parent=1 // pred_fallthru
      _
    // Predicated region
    $region18: #{tpu_custom_call.1} parent=1 // pred_check
      _
    $region19: #{tpu_custom_call.1} parent=1 // pred_check_branch
      %41 = sbr.rel (0) target = $region21
    $region20: #{tpu_custom_call.1} parent=1 // pred_region
      %42 = dma.done [#allocation7], 256
    $region21: #{tpu_custom_call.1} parent=1 // pred_fallthru
      _
    %p43 = scmp.eq.s32.totalorder 0, 0
    // Predicated region
    $region22: #{tpu_custom_call.1} parent=1 // pred_check
      %p44 = pneg %p43
    $region23: #{tpu_custom_call.1} parent=1 // pred_check_branch
      %46 = sbr.rel (%p44) target = $region25
    $region24: #{tpu_custom_call.1} parent=1 // pred_region
      %vm47 = vcmask 261120
      %48 = vst.msk [vmem:[#allocation2] sm:$0xff] %vm47, 0.0
      %49 = vst.msk [vmem:[#allocation2 + $0x8] sm:$0xff] %vm47, 0.0
    $region25: #{tpu_custom_call.1} parent=1 // pred_fallthru
      _
    %v50 = vld [vmem:[#allocation2] sm:$0xff]
    %v51 = vld [vmem:[#allocation2 + $0x8] sm:$0xff]
    %v52 = vld [vmem:[#allocation3] sm:$0xff]
    %v53 = vld [vmem:[#allocation3 + $0x8] sm:$0xff]
    %v54 = vld [vmem:[#allocation6] sm:$0xff]
    %v55 = vld [vmem:[#allocation6 + $0x8] sm:$0xff]
    %vm56 = vcmask 130048
    %v58 = vsel %vm56, %v52, 0
    %v61 = vsel %vm56, %v53, 0
    %63 = vmatprep.subr.mxu0 0.0
    %64 = vmatpush1.msra.mxu0 %v54
    %65 = vmatprep.subr.mxu0 0.0
    %66 = vmatpush1.msra.mxu0 %v55
    %67 = vmatprep.subr.mxu0 0.0
    %68 = vmatpush1.msra.mxu0 0.0
    %69 = vmatprep.subr.mxu0 0.0
    %70 = vmatpush1.msra.mxu0 0.0
    %71 = vmatprep.subr.mxu0 0.0
    %72 = vmatpush1.msra.mxu0 0.0
    %73 = vmatprep.subr.mxu0 0.0
    %74 = vmatpush1.msra.mxu0 0.0
    %75 = vmatprep.subr.mxu0 0.0
    %76 = vmatpush1.msra.mxu0 0.0
    %77 = vmatprep.subr.mxu0 0.0
    %78 = vmatpush1.msra.mxu0 0.0
    %79 = vmatprep.subr.mxu0 0.0
    %80 = vmatpush1.msra.mxu0 0.0
    %81 = vmatprep.subr.mxu0 0.0
    %82 = vmatpush1.msra.mxu0 0.0
    %83 = vmatprep.subr.mxu0 0.0
    %84 = vmatpush1.msra.mxu0 0.0
    %85 = vmatprep.subr.mxu0 0.0
    %86 = vmatpush1.msra.mxu0 0.0
    %87 = vmatprep.subr.mxu0 0.0
    %88 = vmatpush1.msra.mxu0 0.0
    %89 = vmatprep.subr.mxu0 0.0
    %90 = vmatpush1.msra.mxu0 0.0
    %91 = vmatprep.subr.mxu0 0.0
    %92 = vmatpush1.msra.mxu0 0.0
    %93 = vmatprep.subr.mxu0 0.0
    %94 = vmatpush1.msra.mxu0 0.0
    %95 = vmatprep.subr.mxu0 0.0
    %96 = vmatpush1.msra.mxu0 0.0
    %97 = vmatprep.subr.mxu0 0.0
    %98 = vmatpush1.msra.mxu0 0.0
    %99 = vmatprep.subr.mxu0 0.0
    %100 = vmatpush1.msra.mxu0 0.0
    %101 = vmatprep.subr.mxu0 0.0
    %102 = vmatpush1.msra.mxu0 0.0
    %103 = vmatprep.subr.mxu0 0.0
    %104 = vmatpush1.msra.mxu0 0.0
    %105 = vmatprep.subr.mxu0 0.0
    %106 = vmatpush1.msra.mxu0 0.0
    %107 = vmatprep.subr.mxu0 0.0
    %108 = vmatpush1.msra.mxu0 0.0
    %109 = vmatprep.subr.mxu0 0.0
    %110 = vmatpush1.msra.mxu0 0.0
    %111 = vmatprep.subr.mxu0 0.0
    %112 = vmatpush1.msra.mxu0 0.0
    %113 = vmatprep.subr.mxu0 0.0
    %114 = vmatpush1.msra.mxu0 0.0
    %115 = vmatprep.subr.mxu0 0.0
    %116 = vmatpush1.msra.mxu0 0.0
    %117 = vmatprep.subr.mxu0 0.0
    %118 = vmatpush1.msra.mxu0 0.0
    %119 = vmatprep.subr.mxu0 0.0
    %120 = vmatpush1.msra.mxu0 0.0
    %121 = vmatprep.subr.mxu0 0.0
    %122 = vmatpush1.msra.mxu0 0.0
    %123 = vmatprep.subr.mxu0 0.0
    %124 = vmatpush1.msra.mxu0 0.0
    %125 = vmatprep.subr.mxu0 0.0
    %126 = vmatpush1.msra.mxu0 0.0
    %127 = vmatprep.mubr.f32.mxu0 0.0
    %128 = vmatmul.mubr.f32.gmra.mrb[0].mxu0 %v58
    %v129 = vpop.f32.mrb[0].mxu0
    %v130 = vadd.f32 0.0, %v129
    %v131 = vpop.f32.mrb[0].mxu0
    %132 = vmatprep.mubr.f32.mxu0 0.0
    %133 = vmatmul.mubr.f32.gmra.mrb[0].mxu0 %v61
    %v134 = vpop.f32.mrb[0].mxu0
    %v135 = vadd.f32 0.0, %v134
    %v136 = vpop.f32.mrb[0].mxu0
    %137 = vdwg.mxu0
    %v138 = vadd.f32 %v50, %v130
    %v139 = vadd.f32 %v51, %v135
    %vm140 = vcmask 261120
    %141 = vst.msk [vmem:[#allocation2] sm:$0xff] %vm140, %v138
    %142 = vst.msk [vmem:[#allocation2 + $0x8] sm:$0xff] %vm140, %v139
    // Predicated region
    $region26: #{tpu_custom_call.1} parent=1 // pred_check
      %p143 = pneg %p43
    $region27: #{tpu_custom_call.1} parent=1 // pred_check_branch
      %145 = sbr.rel (%p143) target = $region29
    $region28: #{tpu_custom_call.1} parent=1 // pred_region
      %v146 = vld [vmem:[#allocation2] sm:$0xff]
      %v147 = vld [vmem:[#allocation2 + $0x8] sm:$0xff]
      %v148 = vld [vmem:[%s2] sm:$0x1]
      %v150 = vlaneseq
      %v151 = vshrl.u32 %v150, 7
      %v152 = vsub.s32 0, %v151
      %v153 = vrot.slane %v148, %v152
      %v155 = vadd.f32 %v146, %v153
      %v156 = vadd.f32 %v147, %v153
      %157 = vst.msk [vmem:[#allocation8] sm:$0xff] %vm140, %v155
      %158 = vst.msk [vmem:[#allocation8 + $0x8] sm:$0xff] %vm140, %v156
    $region29: #{tpu_custom_call.1} parent=1 // pred_fallthru
      _
    // Predicated region
    $region30: #{tpu_custom_call.1} parent=1 // pred_check
      _
    $region31: #{tpu_custom_call.1} parent=1 // pred_check_branch
      %160 = sbr.rel (0) target = $region33
    $region32: #{tpu_custom_call.1} parent=1 // pred_region
      %s162 = ssub.s32 256, 256
      %163 = vsyncadd [#allocation5], %s162
      %s164 = sshll.u32 [#allocation8], 4
      %s165 = int_to_ptr.vmem [resolvable:$true] %s164
      %170 = dma.vmem_to_hbm [thread:$0]  %s165, 256, %s3, [#allocation5], 128, 128, 8
    $region33: #{tpu_custom_call.1} parent=1 // pred_fallthru
      _
    // Predicated region
    $region34: #{tpu_custom_call.1} parent=1 // pred_check
      _
    $region35: #{tpu_custom_call.1} parent=1 // pred_check_branch
      %172 = sbr.rel (0) target = $region37
    $region36: #{tpu_custom_call.1} parent=1 // pred_region
      %173 = dma.done [#allocation5], 256
    $region37: #{tpu_custom_call.1} parent=1 // pred_fallthru
      _
    %174 = vsyncpa [#allocation4], 1
    %175 = vsyncpa [#allocation7], 1
    %176 = vsyncpa [#allocation5], 1

</llo_original>
